<compile_context>
chip_gen: v5e
topology: v5e:2x2
jax: 0.10.0
libtpu: 0.0.40
codegen_flags: <defaults>
</compile_context>

<pallas_src>
import functools

import jax
import jax.numpy as jnp
from jax.experimental import pallas as pl
from jax.experimental.pallas import tpu as pltpu


def fusion_kernel(x_ref, wa_ref, wb_ref, o_ref, *, C, inv_hw):
    """One grid step processes a (bb, 2C, HW) slab of batches.

    x_ref:  (bb, 2C, HW)   input slab (spatial flattened; last dim = full H*W)
    wa_ref: (2C, R2p)      block-diag, pre-transposed first SE Linear (both gates fused)
    wb_ref: (R2p, 2C)      block-diag, pre-transposed second SE Linear (both gates fused)
    o_ref:  (bb, C, HW)
    """
    # ---- global average pool: one vectorized reduce over the whole slab ----
    # (accumulate in f32; zero extra HBM traffic, per-vreg convert only)
    pooled = jnp.sum(x_ref[...].astype(jnp.float32), axis=-1) * inv_hw        # (bb, 2C)

    # ---- both SE gates for all batches: two tiny fused (block-diagonal) matmuls ----
    h = jnp.maximum(
        jnp.dot(pooled, wa_ref[...], preferred_element_type=jnp.float32), 0.0)  # (bb, R2p)
    g = jax.nn.sigmoid(
        jnp.dot(h, wb_ref[...], preferred_element_type=jnp.float32))            # (bb, 2C)

    # Tiny relayout: (bb, 2C) -> (bb, 2C, 1) channel scales, in the slab's compute dtype.
    gx = g.astype(x_ref.dtype)[:, :, None]

    # ---- apply gates + pairwise attention (+ ReLU), vectorized over the slab ----
    x1 = x_ref[:, :C, :]                      # identity1  (bb, C, HW)
    x2 = x_ref[:, C:, :]                      # identity2  (bb, C, HW)
    x1s = x1 * gx[:, :C]
    x2s = x2 * gx[:, C:]
    # exp(x1s)/(exp(x1s)+exp(x2s)) == sigmoid(x1s - x2s): one transcendental, no inf/inf.
    at1 = jax.nn.sigmoid(x1s - x2s)
    out = x2 + (x1 - x2) * at1                # == x1*at1 + x2*(1 - at1)
    o_ref[...] = jnp.maximum(out, 0.0).astype(o_ref.dtype)


def _vmem_capacity_bytes():
    try:
        return int(pltpu.get_tpu_info().vmem_capacity_bytes)
    except Exception:
        return 64 << 20  # conservative (v7x-sized) fallback


def fusion_forward(x_nchw, w1a, w1b, w2a, w2b, *, batch_block=None):
    B, C2, H, W = x_nchw.shape
    C = C2 // 2
    R = w1a.shape[0]
    HW = H * W

    # No host-side pad: last block dim == full H*W (full-array-dim exemption to the 128 rule).
    x = x_nchw.reshape(B, C2, HW)

    # Fused, pre-transposed, block-diagonal SE weights (hidden dim padded up to 8 so the tiny
    # GEMMs get a non-degenerate sublane tile; zero pad rows/cols contribute nothing).
    f32 = jnp.float32
    R2 = 2 * R
    R2p = ((max(R2, 8) + 7) // 8) * 8
    waT = (jnp.zeros((C2, R2p), f32)
           .at[:C, :R].set(w1a.T.astype(f32))
           .at[C:, R:R2].set(w2a.T.astype(f32)))
    wbT = (jnp.zeros((R2p, C2), f32)
           .at[:R, :C].set(w1b.T.astype(f32))
           .at[R:R2, C:].set(w2b.T.astype(f32)))

    # ---- batch-block sizing (HBM-bound kernel: fewer, bigger grid steps) ----
    itemsize = x.dtype.itemsize
    sub = max(1, 32 // (8 * itemsize)) * 8          # sublane tile: 8 (f32) / 16 (bf16)
    c2p = ((C2 + sub - 1) // sub) * sub
    cp = ((C + sub - 1) // sub) * sub
    hwp = ((HW + 127) // 128) * 128
    in_batch_bytes = c2p * hwp * itemsize
    out_batch_bytes = cp * hwp * itemsize

    cap = _vmem_capacity_bytes()
    budget = int(0.70 * cap)                        # leave headroom below physical VMEM

    if batch_block is None:
        target_in_bytes = 8 << 20                   # ~8 MiB of input per grid step
        bb = max(1, min(B, target_in_bytes // max(in_batch_bytes, 1)))
        if B >= 2:
            # >=2 grid steps so the "parallel" batch axis can use both v7x TensorCores.
            bb = max(1, min(bb, B // 2))
        while B % bb:
            bb -= 1
    else:
        bb = batch_block

    def need_bytes(bb_):
        # double-buffered input + output blocks, plus weights/temps headroom
        return 2 * bb_ * (in_batch_bytes + out_batch_bytes) + (1 << 20)

    # Shrink the block (never the vmem limit below what the block needs) to fit the budget.
    while bb > 1 and need_bytes(bb) > budget:
        bb -= 1
        while B % bb:
            bb -= 1
    # TODO(synk): if even bb == 1 exceeds the budget (very large H*W), add a spatial grid axis
    # with a two-pass pooled-gate scheme instead of raising vmem_limit_bytes further.

    need = need_bytes(bb)
    vmem_limit = int(min(need, 0.95 * cap)) if need > (16 << 20) else None

    grid = (B // bb,)
    kernel = functools.partial(fusion_kernel, C=C, inv_hw=1.0 / HW)

    cost = pl.CostEstimate(
        flops=int(6 * B * C * HW + 4 * B * C2 * R2p),
        transcendentals=int(B * C * HW + B * C2),
        bytes_accessed=int((B * C2 * HW + B * C * HW) * itemsize),
    )

    out = pl.pallas_call(
        kernel,
        out_shape=jax.ShapeDtypeStruct((B, C, HW), x.dtype),
        grid_spec=pltpu.PrefetchScalarGridSpec(
            num_scalar_prefetch=0,
            grid=grid,
            in_specs=[
                pl.BlockSpec((bb, C2, HW), lambda i: (i, 0, 0)),
                pl.BlockSpec(waT.shape, lambda i: (0, 0)),
                pl.BlockSpec(wbT.shape, lambda i: (0, 0)),
            ],
            out_specs=pl.BlockSpec((bb, C, HW), lambda i: (i, 0, 0)),
        ),
        compiler_params=pltpu.CompilerParams(
            dimension_semantics=("parallel",),
            vmem_limit_bytes=vmem_limit,
        ),
        cost_estimate=cost,
    )(x, waT, wbT)

    return out.reshape(B, C, H, W)


def fusion_reference(x_nchw, w1a, w1b, w2a, w2b):
    """Pure-JAX reference mirroring the PyTorch forward exactly."""
    C = x_nchw.shape[1] // 2
    x1 = x_nchw[:, :C]
    x2 = x_nchw[:, C:]

    def se(xh, wa_, wb_):
        y = jnp.mean(xh, axis=(2, 3))                  # adaptive avg pool -> (B, C)
        y = jnp.maximum(y @ wa_.T, 0.0)                # Linear(C, R) no bias + ReLU
        y = jax.nn.sigmoid(y @ wb_.T)                  # Linear(R, C) no bias + Sigmoid
        return xh * y[:, :, None, None]

    x1s = se(x1, w1a, w1b)
    x2s = se(x2, w2a, w2b)
    e1, e2 = jnp.exp(x1s), jnp.exp(x2s)
    at1 = e1 / (e1 + e2)
    at2 = e2 / (e1 + e2)
    return jnp.maximum(x1 * at1 + x2 * at2, 0.0)


if __name__ == "__main__":
    # Module hyperparams: inplanes = C = 32, reduction = 16 -> hidden R = 2.
    # Input x has 2*inplanes channels (forward splits it in half).
    B, C, H, W = 2, 32, 16, 16
    R = max(C // 16, 1)

    key = jax.random.PRNGKey(0)
    kx, k1, k2, k3, k4 = jax.random.split(key, 5)
    x = jax.random.normal(kx, (B, 2 * C, H, W), dtype=jnp.float32)

    # fc1: Linear(C, R) then Linear(R, C); fc2 likewise. PyTorch weight layout (out, in).
    w1a = jax.random.normal(k1, (R, C), dtype=jnp.float32) * 0.1
    w1b = jax.random.normal(k2, (C, R), dtype=jnp.float32) * 0.1
    w2a = jax.random.normal(k3, (R, C), dtype=jnp.float32) * 0.1
    w2b = jax.random.normal(k4, (C, R), dtype=jnp.float32) * 0.1

    out = fusion_forward(x, w1a, w1b, w2a, w2b)
    out = jax.block_until_ready(out)

    ref = fusion_reference(x, w1a, w1b, w2a, w2b)
    assert out.shape == (B, C, H, W)
    assert jnp.allclose(out, ref, atol=1e-5, rtol=1e-5), "mismatch vs reference"

    print("KERNEL_OK")
</pallas_src>

<mosaic_0001>
module attributes {stable_mosaic.version = 11 : i64} {
  func.func @fusion_kernel(%arg0: i32, %arg1: memref<1x64x256xf32, #tpu.memory_space<vmem>>, %arg2: memref<64x8xf32, #tpu.memory_space<vmem>>, %arg3: memref<8x64xf32, #tpu.memory_space<vmem>>, %arg4: memref<1x32x256xf32, #tpu.memory_space<vmem>>) attributes {dimension_semantics = [#tpu.dimension_semantics<parallel>], iteration_bounds = array<i64: 2>, scalar_prefetch = 0 : i64, scratch_operands = 0 : i64, tpu.core_type = #tpu.core_type<tc>, window_params = [{transform_indices = @transform_0, window_bounds = array<i64: 1, 64, 256>}, {pipeline_mode = #tpu.pipeline_mode<synchronous>, transform_indices = @transform_1, window_bounds = array<i64: 64, 8>}, {pipeline_mode = #tpu.pipeline_mode<synchronous>, transform_indices = @transform_2, window_bounds = array<i64: 8, 64>}, {transform_indices = @transform_3, window_bounds = array<i64: 1, 32, 256>}]} {
    %c0 = arith.constant 0 : index
    %c0_0 = arith.constant 0 : index
    %c0_1 = arith.constant 0 : index
    %0 = vector.load %arg1[%c0, %c0_0, %c0_1] : memref<1x64x256xf32, #tpu.memory_space<vmem>>, vector<1x64x256xf32>
    %cst = arith.constant dense<0.000000e+00> : vector<1x64xf32>
    %1 = vector.multi_reduction <add>, %0, %cst [2] : vector<1x64x256xf32> to vector<1x64xf32>
    %cst_2 = arith.constant 3.906250e-03 : f32
    %2 = vector.broadcast %cst_2 : f32 to vector<1x64xf32>
    %3 = arith.mulf %1, %2 : vector<1x64xf32>
    %c0_3 = arith.constant 0 : index
    %c0_4 = arith.constant 0 : index
    %4 = vector.load %arg2[%c0_3, %c0_4] : memref<64x8xf32, #tpu.memory_space<vmem>>, vector<64x8xf32>
    %cst_5 = arith.constant dense<0.000000e+00> : vector<1x8xf32>
    %5 = tpu.matmul %3, %4, %cst_5 {dimension_numbers = #tpu.dot_dimension_numbers<[1], [0], [0], [1], [0, 0, 1, 1], [], []>} : vector<1x64xf32>, vector<64x8xf32>, vector<1x8xf32> -> vector<1x8xf32>
    %cst_6 = arith.constant 0.000000e+00 : f32
    %6 = vector.broadcast %cst_6 : f32 to vector<1x8xf32>
    %7 = arith.maximumf %5, %6 : vector<1x8xf32>
    %c0_7 = arith.constant 0 : index
    %c0_8 = arith.constant 0 : index
    %8 = vector.load %arg3[%c0_7, %c0_8] : memref<8x64xf32, #tpu.memory_space<vmem>>, vector<8x64xf32>
    %cst_9 = arith.constant dense<0.000000e+00> : vector<1x64xf32>
    %9 = tpu.matmul %7, %8, %cst_9 {dimension_numbers = #tpu.dot_dimension_numbers<[1], [0], [0], [1], [0, 0, 1, 1], [], []>} : vector<1x8xf32>, vector<8x64xf32>, vector<1x64xf32> -> vector<1x64xf32>
    %10 = arith.negf %9 : vector<1x64xf32>
    %11 = math.exp %10 : vector<1x64xf32>
    %cst_10 = arith.constant 1.000000e+00 : f32
    %12 = vector.broadcast %cst_10 : f32 to vector<1x64xf32>
    %13 = arith.addf %12, %11 : vector<1x64xf32>
    %14 = arith.divf %12, %13 : vector<1x64xf32>
    %15 = vector.shape_cast %14 : vector<1x64xf32> to vector<1x64x1xf32>
    %c0_11 = arith.constant 0 : index
    %c0_12 = arith.constant 0 : index
    %c0_13 = arith.constant 0 : index
    %16 = vector.load %arg1[%c0_11, %c0_12, %c0_13] : memref<1x64x256xf32, #tpu.memory_space<vmem>>, vector<1x32x256xf32>
    %c0_14 = arith.constant 0 : index
    %c32 = arith.constant 32 : index
    %c0_15 = arith.constant 0 : index
    %17 = vector.load %arg1[%c0_14, %c32, %c0_15] : memref<1x64x256xf32, #tpu.memory_space<vmem>>, vector<1x32x256xf32>
    %18 = vector.extract_strided_slice %15 {offsets = [0, 0, 0], sizes = [1, 32, 1], strides = [1, 1, 1]} : vector<1x64x1xf32> to vector<1x32x1xf32>
    %19 = vector.broadcast %18 : vector<1x32x1xf32> to vector<1x32x256xf32>
    %20 = arith.mulf %16, %19 : vector<1x32x256xf32>
    %21 = vector.extract_strided_slice %15 {offsets = [0, 32, 0], sizes = [1, 32, 1], strides = [1, 1, 1]} : vector<1x64x1xf32> to vector<1x32x1xf32>
    %22 = vector.broadcast %21 : vector<1x32x1xf32> to vector<1x32x256xf32>
    %23 = arith.mulf %17, %22 : vector<1x32x256xf32>
    %24 = arith.subf %20, %23 : vector<1x32x256xf32>
    %25 = arith.negf %24 : vector<1x32x256xf32>
    %26 = math.exp %25 : vector<1x32x256xf32>
    %cst_16 = arith.constant 1.000000e+00 : f32
    %27 = vector.broadcast %cst_16 : f32 to vector<1x32x256xf32>
    %28 = arith.addf %27, %26 : vector<1x32x256xf32>
    %29 = arith.divf %27, %28 : vector<1x32x256xf32>
    %30 = arith.subf %16, %17 : vector<1x32x256xf32>
    %31 = arith.mulf %30, %29 : vector<1x32x256xf32>
    %32 = arith.addf %17, %31 : vector<1x32x256xf32>
    %cst_17 = arith.constant 0.000000e+00 : f32
    %33 = vector.broadcast %cst_17 : f32 to vector<1x32x256xf32>
    %34 = arith.maximumf %32, %33 : vector<1x32x256xf32>
    %c0_18 = arith.constant 0 : index
    %c0_19 = arith.constant 0 : index
    %c0_20 = arith.constant 0 : index
    %35 = vector.load %arg4[%c0_18, %c0_19, %c0_20] : memref<1x32x256xf32, #tpu.memory_space<vmem>>, vector<1x32x256xf32>
    tpu.vector_store %arg4[%c0_18, %c0_19, %c0_20], %34 {strides = array<i32>} : memref<1x32x256xf32, #tpu.memory_space<vmem>>, vector<1x32x256xf32>,
    return
  }
  func.func @transform_0(%arg0: i32) -> (i32, i32, i32) {
    %c0_i32 = arith.constant 0 : i32
    %c0_i32_0 = arith.constant 0 : i32
    %c0_i32_1 = arith.constant 0 : i32
    return %arg0, %c0_i32, %c0_i32_0 : i32, i32, i32
  }
  func.func @transform_1(%arg0: i32) -> (i32, i32) {
    %c0_i32 = arith.constant 0 : i32
    %c0_i32_0 = arith.constant 0 : i32
    %c0_i32_1 = arith.constant 0 : i32
    return %c0_i32, %c0_i32_0 : i32, i32
  }
  func.func @transform_2(%arg0: i32) -> (i32, i32) {
    %c0_i32 = arith.constant 0 : i32
    %c0_i32_0 = arith.constant 0 : i32
    %c0_i32_1 = arith.constant 0 : i32
    return %c0_i32, %c0_i32_0 : i32, i32
  }
  func.func @transform_3(%arg0: i32) -> (i32, i32, i32) {
    %c0_i32 = arith.constant 0 : i32
    %c0_i32_0 = arith.constant 0 : i32
    %c0_i32_1 = arith.constant 0 : i32
    return %arg0, %c0_i32, %c0_i32_0 : i32, i32, i32
  }
}

</mosaic_0001>

<llo_original>
// kernel: tpu_custom_call.1
$region0: #{tpu_custom_call.1}
  #allocation0 [shape = 'u32[]', space=smem, size = 0x4, offset = 0x4, fixed_abs, tag = 'smem constant byte address 0x4 - core index']
  #allocation1 [shape = 'u32[72,128]{1,0:T(1,128)}', space=vmem, size = 0x9000, scoped, tag = 'internal scratch']
  %s0 = inlined_call_operand.hbm [shape: f32[2,64,256], index: 0, kind: input, shape index: {}]
  %s1 = inlined_call_operand.vmem [shape: f32[64,8], index: 1, kind: input, shape index: {}]
  %s2 = inlined_call_operand.vmem [shape: f32[8,64], index: 2, kind: input, shape index: {}]
  %s3 = inlined_call_operand.hbm [shape: f32[2,32,256], index: 3, kind: output, shape index: {}]
  %s4 = sld [smem:[#allocation0]]
  $region49: #{tpu_custom_call.1} parent=0
    _
  %s6 = ssub.s32 1, %s4
  %s7 = scalar_select 0, %s6, %s4
  $region1: #{tpu_custom_call.1} parent=0
    #allocation2 [shape = 'u8[131072]{0}', space=vmem, size = 0x20000, scoped, tag = 'input window, operand 0']
    #allocation3 [shape = 's32[2]{0}', space=sflag, size = 0x8, scoped, tag = 'scoped memory for tpu_custom_call.1']
    #allocation4 [shape = 's32[2]{0}', space=sflag, size = 0x8, scoped, tag = 'scoped memory for tpu_custom_call.1']
    #allocation5 [shape = 'u8[65536]{0}', space=vmem, size = 0x10000, scoped, tag = 'output window, operand 0']
    %8 = vsyncpa [#allocation3], 0
    %s9 = scalar_lea.sflag [#allocation3], 1
    %10 = vsyncpa %s9, 0
    %11 = vsyncpa [#allocation4], 0
    %s12 = scalar_lea.sflag [#allocation4], 1
    %13 = vsyncpa %s12, 0
    loop: start=0, step=1, limit=4
    $region2: #{tpu_custom_call.1} parent=1 // loop_pre_header
      _
    $region3: #{tpu_custom_call.1} parent=1 // loop_header
      %s15 = sphi 0, %s19
      %p16 = scmp.ge.s32.totalorder %s15, 4
      %s25 = sphi 0, %s27
      %s28 = sphi 0, %s25
      %s29 = sphi 0, %s28
      %s45 = sphi 0, %s29
      %s49 = sphi 0, %s49
      %s51 = sphi 0, %s49
      %s52 = sphi 0, %s51
      %s66 = sphi 0, %s52
      %s70 = sphi 0, %s70
      %s72 = sphi 0, %s70
      %s73 = sphi 0, %s72
      %s87 = sphi 0, %s73
      %s93 = sphi 0, %s95
      %s96 = sphi 0, %s93
      %s97 = sphi 0, %s96
      %s113 = sphi 0, %s97
    $region4: #{tpu_custom_call.1} parent=1 // loop_header_branch
      %18 = sbr.rel (%p16) target = $region8
    $region5: #{tpu_custom_call.1} parent=1 // loop_body
      %s20 = ssub.s32 %s15, 1
      %s21 = ssub.s32 %s15, 2
      %s22 = sadd.s32 %s15, 1
      %s23 = ssub.s32 %s15, %s22
      %p24 = scmp.eq.s32.totalorder %s23, 0
      %s26 = sadd.s32 %s25, 1
      %s27 = scalar_select %p24, %s25, %s26
      %p30 = pneg %p24
      %p31 = scmp.eq.s32.totalorder %s15, 1
      %p32 = por %p30, %p31
      %p33 = scmp.ne.s32.totalorder %s25, %s28
      %p34 = scmp.eq.s32.totalorder %s15, 0
      %p35 = por %p33, %p34
      %p36 = scmp.ne.s32.totalorder %s25, %s28
      %p37 = scmp.eq.s32.totalorder %s20, 1
      %p38 = por %p36, %p37
      %p39 = scmp.ne.s32.totalorder %s28, %s29
      %p40 = scmp.eq.s32.totalorder %s20, 0
      %p41 = por %p39, %p40
      %p42 = scmp.ne.s32.totalorder %s28, %s29
      %p43 = scmp.eq.s32.totalorder %s21, 1
      %p44 = por %p42, %p43
      %p46 = scmp.ne.s32.totalorder %s29, %s45
      %p47 = scmp.eq.s32.totalorder %s21, 0
      %p48 = por %p46, %p47
      %s50 = sadd.s32 %s49, 1
      %p53 = scmp.eq.s32.totalorder %s15, 1
      %p54 = scmp.ne.s32.totalorder %s49, %s51
      %p55 = scmp.eq.s32.totalorder %s15, 0
      %p56 = por %p54, %p55
      %p57 = scmp.ne.s32.totalorder %s49, %s51
      %p58 = scmp.eq.s32.totalorder %s20, 1
      %p59 = por %p57, %p58
      %p60 = scmp.ne.s32.totalorder %s51, %s52
      %p61 = scmp.eq.s32.totalorder %s20, 0
      %p62 = por %p60, %p61
      %p63 = scmp.ne.s32.totalorder %s51, %s52
      %p64 = scmp.eq.s32.totalorder %s21, 1
      %p65 = por %p63, %p64
      %p67 = scmp.ne.s32.totalorder %s52, %s66
      %p68 = scmp.eq.s32.totalorder %s21, 0
      %p69 = por %p67, %p68
      %s71 = sadd.s32 %s70, 1
      %p74 = scmp.eq.s32.totalorder %s15, 1
      %p75 = scmp.ne.s32.totalorder %s70, %s72
      %p76 = scmp.eq.s32.totalorder %s15, 0
      %p77 = por %p75, %p76
      %p78 = scmp.ne.s32.totalorder %s70, %s72
      %p79 = scmp.eq.s32.totalorder %s20, 1
      %p80 = por %p78, %p79
      %p81 = scmp.ne.s32.totalorder %s72, %s73
      %p82 = scmp.eq.s32.totalorder %s20, 0
      %p83 = por %p81, %p82
      %p84 = scmp.ne.s32.totalorder %s72, %s73
      %p85 = scmp.eq.s32.totalorder %s21, 1
      %p86 = por %p84, %p85
      %p88 = scmp.ne.s32.totalorder %s73, %s87
      %p89 = scmp.eq.s32.totalorder %s21, 0
      %p90 = por %p88, %p89
      %s91 = ssub.s32 %s15, %s22
      %p92 = scmp.eq.s32.totalorder %s91, 0
      %s94 = sadd.s32 %s93, 1
      %s95 = scalar_select %p92, %s93, %s94
      %p98 = pneg %p92
      %p99 = scmp.eq.s32.totalorder %s15, 1
      %p100 = por %p98, %p99
      %p101 = scmp.ne.s32.totalorder %s93, %s96
      %p102 = scmp.eq.s32.totalorder %s15, 0
      %p103 = por %p101, %p102
      %p104 = scmp.ne.s32.totalorder %s93, %s96
      %p105 = scmp.eq.s32.totalorder %s20, 1
      %p106 = por %p104, %p105
      %p107 = scmp.ne.s32.totalorder %s96, %s97
      %p108 = scmp.eq.s32.totalorder %s20, 0
      %p109 = por %p107, %p108
      %p110 = scmp.ne.s32.totalorder %s96, %s97
      %p111 = scmp.eq.s32.totalorder %s21, 1
      %p112 = por %p110, %p111
      %p114 = scmp.ne.s32.totalorder %s97, %s113
      %p115 = scmp.eq.s32.totalorder %s21, 0
      %p116 = por %p114, %p115
      %p117 = scmp.le.s32.totalorder 1, %s15
      %p118 = scmp.lt.s32.totalorder %s15, 3
      %p119 = pnand %p117, %p118
      %p120 = pneg %p119
      // Predicated region
      $region9: #{tpu_custom_call.1} parent=5 // pred_check
        _
      $region10: #{tpu_custom_call.1} parent=5 // pred_check_branch
        %122 = sbr.rel (%p119) target = $region12
      $region11: #{tpu_custom_call.1} parent=5 // pred_region
        %s123 = ssub.s32 %s15, 1
        // Predicated region
        $region13: #{tpu_custom_call.1} parent=11 // pred_check
          %p124 = pneg %p62
        $region14: #{tpu_custom_call.1} parent=11 // pred_check_branch
          %126 = sbr.rel (%p124) target = $region16
        $region15: #{tpu_custom_call.1} parent=11 // pred_region
          _
        $region16: #{tpu_custom_call.1} parent=11 // pred_fallthru
          _
        // Predicated region
        $region17: #{tpu_custom_call.1} parent=11 // pred_check
          %p127 = pneg %p83
        $region18: #{tpu_custom_call.1} parent=11 // pred_check_branch
          %129 = sbr.rel (%p127) target = $region20
        $region19: #{tpu_custom_call.1} parent=11 // pred_region
          _
        $region20: #{tpu_custom_call.1} parent=11 // pred_fallthru
          _
      $region12: #{tpu_custom_call.1} parent=5 // pred_fallthru
        _
      %p130 = scmp.lt.s32.totalorder %s15, 2
      // Predicated region
      $region21: #{tpu_custom_call.1} parent=5 // pred_check
        %p131 = pneg %p130
      $region22: #{tpu_custom_call.1} parent=5 // pred_check_branch
        %133 = sbr.rel (%p131) target = $region24
      $region23: #{tpu_custom_call.1} parent=5 // pred_region
        // Predicated region
        $region25: #{tpu_custom_call.1} parent=23 // pred_check
          %p134 = pneg %p35
        $region26: #{tpu_custom_call.1} parent=23 // pred_check_branch
          %136 = sbr.rel (%p134) target = $region28
        $region27: #{tpu_custom_call.1} parent=23 // pred_region
          %s137 = sand.u32 %s25, 1
          %s138 = scalar_lea.sflag [#allocation3], %s137
          %s139 = sand.u32 %s25, 1
          %s140 = smul.addr %s139, 128
          %s141 = scalar_lea.vmem [#allocation2], %s140
          %143 = vsyncadd %s138, 0
          %s144 = smul.addr %s15, 16
          %s145 = smul.addr %s144, 8
          %s146 = scalar_lea.hbm %s0, %s145
          %s147 = sshll.u32 %s146, 4
          %s148 = int_to_ptr.hbm [resolvable:$true] %s147
          %s149 = sshll.u32 %s141, 4
          %s150 = int_to_ptr.vmem [resolvable:$true] %s149
          %155 = dma.hbm_to_vmem [thread:$0]  %s148, 2048, %s150, %s138, 256, 256, 16
        $region28: #{tpu_custom_call.1} parent=23 // pred_fallthru
          _
      $region24: #{tpu_custom_call.1} parent=5 // pred_fallthru
        _
      %p156 = scmp.le.s32.totalorder 1, %s15
      %p157 = scmp.lt.s32.totalorder %s15, 3
      %p158 = pnand %p156, %p157
      %p159 = pneg %p158
      // Predicated region
      $region29: #{tpu_custom_call.1} parent=5 // pred_check
        _
      $region30: #{tpu_custom_call.1} parent=5 // pred_check_branch
        %161 = sbr.rel (%p158) target = $region32
      $region31: #{tpu_custom_call.1} parent=5 // pred_region
        %s162 = ssub.s32 %s15, 1
        %s163 = sand.u32 %s28, 1
        %s164 = scalar_lea.sflag [#allocation3], %s163
        %s165 = sand.u32 %s28, 1
        %s166 = smul.addr %s165, 128
        %s167 = scalar_lea.vmem [#allocation2], %s166
        // Predicated region
        $region33: #{tpu_custom_call.1} parent=31 // pred_check
          %p168 = pneg %p41
        $region34: #{tpu_custom_call.1} parent=31 // pred_check_branch
          %170 = sbr.rel (%p168) target = $region36
        $region35: #{tpu_custom_call.1} parent=31 // pred_region
          %172 = dma.done %s164, 2048
        $region36: #{tpu_custom_call.1} parent=31 // pred_fallthru
          _
        %s173 = sand.u32 %s28, 1
        %s174 = scalar_lea.sflag [#allocation3], %s173
        %s175 = sand.u32 %s28, 1
        %s176 = smul.addr %s175, 128
        %s177 = scalar_lea.vmem [#allocation2], %s176
        %p178 = pneg %p41
        %p179 = pneg %p38
        %p180 = pneg %p62
        %p181 = pneg %p59
        %p182 = pneg %p83
        %p183 = pneg %p80
        %p184 = pneg %p109
        %p185 = pneg %p106
        %s186 = sand.u32 %s96, 1
        %s187 = scalar_lea.sflag [#allocation4], %s186
        %s188 = sand.u32 %s96, 1
        %s189 = smul.addr %s188, 64
        %s190 = scalar_lea.vmem [#allocation5], %s189
        %v191 = vld [vmem:[%s167] sm:$0xff]
        %v192 = vld [vmem:[%s167 + $0x8] sm:$0xff]
        %v193 = vld [vmem:[%s167 + $0x10] sm:$0xff]
        %v194 = vld [vmem:[%s167 + $0x18] sm:$0xff]
        %v195 = vld [vmem:[%s167 + $0x20] sm:$0xff]
        %v196 = vld [vmem:[%s167 + $0x28] sm:$0xff]
        %v197 = vld [vmem:[%s167 + $0x30] sm:$0xff]
        %v198 = vld [vmem:[%s167 + $0x38] sm:$0xff]
        %v199 = vld [vmem:[%s167 + $0x40] sm:$0xff]
        %v200 = vld [vmem:[%s167 + $0x48] sm:$0xff]
        %v201 = vld [vmem:[%s167 + $0x50] sm:$0xff]
        %v202 = vld [vmem:[%s167 + $0x58] sm:$0xff]
        %v203 = vld [vmem:[%s167 + $0x60] sm:$0xff]
        %v204 = vld [vmem:[%s167 + $0x68] sm:$0xff]
        %v205 = vld [vmem:[%s167 + $0x70] sm:$0xff]
        %v206 = vld [vmem:[%s167 + $0x78] sm:$0xff]
        %v207 = vadd.f32 %v191, %v192
        %208 = vadd.xlane.f32.xlu0 %v207
        %v209 = vpop.xlane.xlu0 %208
        %v210 = vadd.f32 %v193, %v194
        %211 = vadd.xlane.f32.xlu0 %v210
        %v212 = vpop.xlane.xlu0 %211
        %v213 = vadd.f32 %v195, %v196
        %214 = vadd.xlane.f32.xlu0 %v213
        %v215 = vpop.xlane.xlu0 %214
        %v216 = vadd.f32 %v197, %v198
        %217 = vadd.xlane.f32.xlu0 %v216
        %v218 = vpop.xlane.xlu0 %217
        %v219 = vadd.f32 %v199, %v200
        %220 = vadd.xlane.f32.xlu0 %v219
        %v221 = vpop.xlane.xlu0 %220
        %v222 = vadd.f32 %v201, %v202
        %223 = vadd.xlane.f32.xlu0 %v222
        %v224 = vpop.xlane.xlu0 %223
        %v225 = vadd.f32 %v203, %v204
        %226 = vadd.xlane.f32.xlu0 %v225
        %v227 = vpop.xlane.xlu0 %226
        %v228 = vadd.f32 %v205, %v206
        %229 = vadd.xlane.f32.xlu0 %v228
        %v230 = vpop.xlane.xlu0 %229
        %v231 = vmul.f32 %v209, 0.00390625
        %v232 = vmul.f32 %v212, 0.00390625
        %v233 = vmul.f32 %v215, 0.00390625
        %v234 = vmul.f32 %v218, 0.00390625
        %v235 = vmul.f32 %v221, 0.00390625
        %v236 = vmul.f32 %v224, 0.00390625
        %v237 = vmul.f32 %v227, 0.00390625
        %v238 = vmul.f32 %v230, 0.00390625
        %v239 = vld [vmem:[%s1] sm:$0xff]
        %v240 = vld [vmem:[%s1 + $0x8] sm:$0xff]
        %v241 = vld [vmem:[%s1 + $0x10] sm:$0xff]
        %v242 = vld [vmem:[%s1 + $0x18] sm:$0xff]
        %v243 = vld [vmem:[%s1 + $0x20] sm:$0xff]
        %v244 = vld [vmem:[%s1 + $0x28] sm:$0xff]
        %v245 = vld [vmem:[%s1 + $0x30] sm:$0xff]
        %v246 = vld [vmem:[%s1 + $0x38] sm:$0xff]
        %v255 = vlaneseq
        %v256 = vand.u32 %v255, 127
        %v257 = vperm.slane %v231, %v256
        %v258 = vadd.s32 %v256, 4294967288
        %v259 = vperm.slane %v232, %v258
        %vm260 = vcmask 130112
        %v261 = vsel %vm260, %v259, %v257
        %v262 = vadd.s32 %v256, 4294967280
        %v263 = vperm.slane %v233, %v262
        %vm264 = vcmask 195712
        %v265 = vsel %vm264, %v263, %v261
        %v266 = vadd.s32 %v256, 4294967272
        %v267 = vperm.slane %v234, %v266
        %vm268 = vcmask 261312
        %v269 = vsel %vm268, %v267, %v265
        %v270 = vadd.s32 %v256, 4294967264
        %v271 = vperm.slane %v235, %v270
        %vm272 = vcmask 326912
        %v273 = vsel %vm272, %v271, %v269
        %v274 = vadd.s32 %v256, 4294967256
        %v275 = vperm.slane %v236, %v274
        %vm276 = vcmask 392512
        %v277 = vsel %vm276, %v275, %v273
        %v278 = vadd.s32 %v256, 4294967248
        %v279 = vperm.slane %v237, %v278
        %vm280 = vcmask 458112
        %v281 = vsel %vm280, %v279, %v277
        %v282 = vadd.s32 %v256, 4294967240
        %v283 = vperm.slane %v238, %v282
        %vm284 = vcmask 523712
        %v285 = vsel %vm284, %v283, %v281
        %vm286 = vcmask 523264
        %v287 = vsel %vm286, %v285, 0
        %289 = vmatpush.msra.mxu0 0.0
        %290 = vmatpush.msra.mxu0 0.0
        %291 = vmatpush.msra.mxu0 0.0
        %292 = vmatpush.msra.mxu0 0.0
        %293 = vmatpush.msra.mxu0 0.0
        %294 = vmatpush.msra.mxu0 0.0
        %295 = vmatpush.msra.mxu0 0.0
        %296 = vmatpush.msra.mxu0 0.0
        %297 = vmatpush.msra.mxu0 %v246
        %298 = vmatpush.msra.mxu0 %v245
        %299 = vmatpush.msra.mxu0 %v244
        %300 = vmatpush.msra.mxu0 %v243
        %301 = vmatpush.msra.mxu0 %v242
        %302 = vmatpush.msra.mxu0 %v241
        %303 = vmatpush.msra.mxu0 %v240
        %304 = vmatpush.msra.mxu0 %v239
        %305 = vmatmul.f32.gmra.mxu0 %v287
        %v306 = vpop.f32.mrf.mxu0
        %v307 = vadd.f32 0.0, %v306
        %308 = vdwg.mxu0
        %v309 = vmax.f32 %v307, 0.0
        %v310 = vld [vmem:[%s2] sm:$0xff]
        %vm311 = vcmask 64512
        %v313 = vsel %vm311, %v309, 0
        %315 = vmatpush.msra.mxu0 0.0
        %316 = vmatpush.msra.mxu0 0.0
        %317 = vmatpush.msra.mxu0 0.0
        %318 = vmatpush.msra.mxu0 0.0
        %319 = vmatpush.msra.mxu0 0.0
        %320 = vmatpush.msra.mxu0 0.0
        %321 = vmatpush.msra.mxu0 0.0
        %322 = vmatpush.msra.mxu0 0.0
        %323 = vmatpush.msra.mxu0 0.0
        %324 = vmatpush.msra.mxu0 0.0
        %325 = vmatpush.msra.mxu0 0.0
        %326 = vmatpush.msra.mxu0 0.0
        %327 = vmatpush.msra.mxu0 0.0
        %328 = vmatpush.msra.mxu0 0.0
        %329 = vmatpush.msra.mxu0 0.0
        %330 = vmatpush.msra.mxu0 %v310
        %331 = vmatmul.f32.gmra.mxu0 %v313
        %v332 = vpop.f32.mrf.mxu0
        %v333 = vadd.f32 0.0, %v332
        %334 = vdwg.mxu0
        %v335 = vxor.u32 %v333, 2147483648
        %v336 = vmul.f32 %v335, 1.442695
        %v337 = vpow.pop %v336
        %v338 = vadd.f32 %v337, 1.0
        %v339 = vrcp.pop %v338
        %v340 = vmul.f32 %v338, %v339
        %v341 = vsub.f32 1.0, %v340
        %v342 = vmul.f32 %v339, %v341
        %v343 = vadd.f32 %v339, %v342
        %vm344 = vweird.f32 %v338
        %vm345 = vweird.f32 %v339
        %vm346 = vmor %vm344, %vm345
        %v347 = vsel %vm346, %v339, %v343
        %v348 = vand.u32 2147483647, %v338
        %vm349 = vcmp.eq.f32.partialorder %v348, 8.507059e+37
        %v350 = vand.u32 %v338, 2147483648
        %v351 = vor.u32 1.1754944e-38, %v350
        %v352 = vsel %vm349, %v351, %v347
        %v353 = vmul.f32 1.0, %v352
        %v354 = vperm.slane %v353, 0
        %v355 = vlaneseq
        %v356 = vshrl.u32 %v355, 7
        %358 = vset.pattern.permute.xlu0 %v356
        %359 = vperm.xlu0 %358, %v354
        %v360 = vpop.permute.xlu0 %359
        %v361 = vlaneseq
        %v362 = vshrl.u32 %v361, 7
        %v363 = vadd.s32 %v362, 8
        %364 = vset.pattern.permute.xlu0 %v363
        %365 = vperm.xlu0 %364, %v354
        %v366 = vpop.permute.xlu0 %365
        %v367 = vlaneseq
        %v368 = vshrl.u32 %v367, 7
        %v369 = vadd.s32 %v368, 16
        %370 = vset.pattern.permute.xlu0 %v369
        %371 = vperm.xlu0 %370, %v354
        %v372 = vpop.permute.xlu0 %371
        %v373 = vlaneseq
        %v374 = vshrl.u32 %v373, 7
        %v375 = vadd.s32 %v374, 24
        %376 = vset.pattern.permute.xlu0 %v375
        %377 = vperm.xlu0 %376, %v354
        %v378 = vpop.permute.xlu0 %377
        %v379 = vlaneseq
        %v380 = vshrl.u32 %v379, 7
        %v381 = vadd.s32 %v380, 32
        %382 = vset.pattern.permute.xlu0 %v381
        %383 = vperm.xlu0 %382, %v354
        %v384 = vpop.permute.xlu0 %383
        %v385 = vlaneseq
        %v386 = vshrl.u32 %v385, 7
        %v387 = vadd.s32 %v386, 40
        %388 = vset.pattern.permute.xlu0 %v387
        %389 = vperm.xlu0 %388, %v354
        %v390 = vpop.permute.xlu0 %389
        %v391 = vlaneseq
        %v392 = vshrl.u32 %v391, 7
        %v393 = vadd.s32 %v392, 48
        %394 = vset.pattern.permute.xlu0 %v393
        %395 = vperm.xlu0 %394, %v354
        %v396 = vpop.permute.xlu0 %395
        %v397 = vlaneseq
        %v398 = vshrl.u32 %v397, 7
        %v399 = vadd.s32 %v398, 56
        %400 = vset.pattern.permute.xlu0 %v399
        %401 = vperm.xlu0 %400, %v354
        %v402 = vpop.permute.xlu0 %401
        %v403 = vld [vmem:[%s167] sm:$0xff]
        %v404 = vld [vmem:[%s167 + $0x8] sm:$0xff]
        %v405 = vld [vmem:[%s167 + $0x10] sm:$0xff]
        %v406 = vld [vmem:[%s167 + $0x18] sm:$0xff]
        %v407 = vld [vmem:[%s167 + $0x20] sm:$0xff]
        %v408 = vld [vmem:[%s167 + $0x28] sm:$0xff]
        %v409 = vld [vmem:[%s167 + $0x30] sm:$0xff]
        %v410 = vld [vmem:[%s167 + $0x38] sm:$0xff]
        %v411 = vmul.f32 %v403, %v360
        %v412 = vmul.f32 %v404, %v360
        %v413 = vmul.f32 %v405, %v366
        %v414 = vmul.f32 %v406, %v366
        %v415 = vmul.f32 %v407, %v372
        %v416 = vmul.f32 %v408, %v372
        %v417 = vmul.f32 %v409, %v378
        %v418 = vmul.f32 %v410, %v378
        %v419 = vmul.f32 %v199, %v384
        %v420 = vmul.f32 %v200, %v384
        %v421 = vmul.f32 %v201, %v390
        %v422 = vmul.f32 %v202, %v390
        %v423 = vmul.f32 %v203, %v396
        %v424 = vmul.f32 %v204, %v396
        %v425 = vmul.f32 %v205, %v402
        %v426 = vmul.f32 %v206, %v402
        %v427 = vsub.f32 %v411, %v419
        %v428 = vsub.f32 %v412, %v420
        %v429 = vsub.f32 %v413, %v421
        %v430 = vsub.f32 %v414, %v422
        %v431 = vsub.f32 %v415, %v423
        %v432 = vsub.f32 %v416, %v424
        %v433 = vsub.f32 %v417, %v425
        %v434 = vsub.f32 %v418, %v426
        %v435 = vxor.u32 %v427, 2147483648
        %v436 = vxor.u32 %v428, 2147483648
        %v437 = vxor.u32 %v429, 2147483648
        %v438 = vxor.u32 %v430, 2147483648
        %v439 = vxor.u32 %v431, 2147483648
        %v440 = vxor.u32 %v432, 2147483648
        %v441 = vxor.u32 %v433, 2147483648
        %v442 = vxor.u32 %v434, 2147483648
        %v443 = vmul.f32 %v435, 1.442695
        %v444 = vpow.pop %v443
        %v445 = vmul.f32 %v436, 1.442695
        %v446 = vpow.pop %v445
        %v447 = vmul.f32 %v437, 1.442695
        %v448 = vpow.pop %v447
        %v449 = vmul.f32 %v438, 1.442695
        %v450 = vpow.pop %v449
        %v451 = vmul.f32 %v439, 1.442695
        %v452 = vpow.pop %v451
        %v453 = vmul.f32 %v440, 1.442695
        %v454 = vpow.pop %v453
        %v455 = vmul.f32 %v441, 1.442695
        %v456 = vpow.pop %v455
        %v457 = vmul.f32 %v442, 1.442695
        %v458 = vpow.pop %v457
        %v459 = vadd.f32 %v444, 1.0
        %v460 = vadd.f32 %v446, 1.0
        %v461 = vadd.f32 %v448, 1.0
        %v462 = vadd.f32 %v450, 1.0
        %v463 = vadd.f32 %v452, 1.0
        %v464 = vadd.f32 %v454, 1.0
        %v465 = vadd.f32 %v456, 1.0
        %v466 = vadd.f32 %v458, 1.0
        %v467 = vrcp.pop %v459
        %v468 = vmul.f32 %v459, %v467
        %v469 = vsub.f32 1.0, %v468
        %v470 = vmul.f32 %v467, %v469
        %v471 = vadd.f32 %v467, %v470
        %vm472 = vweird.f32 %v459
        %vm473 = vweird.f32 %v467
        %vm474 = vmor %vm472, %vm473
        %v475 = vsel %vm474, %v467, %v471
        %v476 = vand.u32 2147483647, %v459
        %vm477 = vcmp.eq.f32.partialorder %v476, 8.507059e+37
        %v478 = vand.u32 %v459, 2147483648
        %v479 = vor.u32 1.1754944e-38, %v478
        %v480 = vsel %vm477, %v479, %v475
        %v481 = vmul.f32 1.0, %v480
        %v482 = vrcp.pop %v460
        %v483 = vmul.f32 %v460, %v482
        %v484 = vsub.f32 1.0, %v483
        %v485 = vmul.f32 %v482, %v484
        %v486 = vadd.f32 %v482, %v485
        %vm487 = vweird.f32 %v460
        %vm488 = vweird.f32 %v482
        %vm489 = vmor %vm487, %vm488
        %v490 = vsel %vm489, %v482, %v486
        %v491 = vand.u32 2147483647, %v460
        %vm492 = vcmp.eq.f32.partialorder %v491, 8.507059e+37
        %v493 = vand.u32 %v460, 2147483648
        %v494 = vor.u32 1.1754944e-38, %v493
        %v495 = vsel %vm492, %v494, %v490
        %v496 = vmul.f32 1.0, %v495
        %v497 = vrcp.pop %v461
        %v498 = vmul.f32 %v461, %v497
        %v499 = vsub.f32 1.0, %v498
        %v500 = vmul.f32 %v497, %v499
        %v501 = vadd.f32 %v497, %v500
        %vm502 = vweird.f32 %v461
        %vm503 = vweird.f32 %v497
        %vm504 = vmor %vm502, %vm503
        %v505 = vsel %vm504, %v497, %v501
        %v506 = vand.u32 2147483647, %v461
        %vm507 = vcmp.eq.f32.partialorder %v506, 8.507059e+37
        %v508 = vand.u32 %v461, 2147483648
        %v509 = vor.u32 1.1754944e-38, %v508
        %v510 = vsel %vm507, %v509, %v505
        %v511 = vmul.f32 1.0, %v510
        %v512 = vrcp.pop %v462
        %v513 = vmul.f32 %v462, %v512
        %v514 = vsub.f32 1.0, %v513
        %v515 = vmul.f32 %v512, %v514
        %v516 = vadd.f32 %v512, %v515
        %vm517 = vweird.f32 %v462
        %vm518 = vweird.f32 %v512
        %vm519 = vmor %vm517, %vm518
        %v520 = vsel %vm519, %v512, %v516
        %v521 = vand.u32 2147483647, %v462
        %vm522 = vcmp.eq.f32.partialorder %v521, 8.507059e+37
        %v523 = vand.u32 %v462, 2147483648
        %v524 = vor.u32 1.1754944e-38, %v523
        %v525 = vsel %vm522, %v524, %v520
        %v526 = vmul.f32 1.0, %v525
        %v527 = vrcp.pop %v463
        %v528 = vmul.f32 %v463, %v527
        %v529 = vsub.f32 1.0, %v528
        %v530 = vmul.f32 %v527, %v529
        %v531 = vadd.f32 %v527, %v530
        %vm532 = vweird.f32 %v463
        %vm533 = vweird.f32 %v527
        %vm534 = vmor %vm532, %vm533
        %v535 = vsel %vm534, %v527, %v531
        %v536 = vand.u32 2147483647, %v463
        %vm537 = vcmp.eq.f32.partialorder %v536, 8.507059e+37
        %v538 = vand.u32 %v463, 2147483648
        %v539 = vor.u32 1.1754944e-38, %v538
        %v540 = vsel %vm537, %v539, %v535
        %v541 = vmul.f32 1.0, %v540
        %v542 = vrcp.pop %v464
        %v543 = vmul.f32 %v464, %v542
        %v544 = vsub.f32 1.0, %v543
        %v545 = vmul.f32 %v542, %v544
        %v546 = vadd.f32 %v542, %v545
        %vm547 = vweird.f32 %v464
        %vm548 = vweird.f32 %v542
        %vm549 = vmor %vm547, %vm548
        %v550 = vsel %vm549, %v542, %v546
        %v551 = vand.u32 2147483647, %v464
        %vm552 = vcmp.eq.f32.partialorder %v551, 8.507059e+37
        %v553 = vand.u32 %v464, 2147483648
        %v554 = vor.u32 1.1754944e-38, %v553
        %v555 = vsel %vm552, %v554, %v550
        %v556 = vmul.f32 1.0, %v555
        %v557 = vrcp.pop %v465
        %v558 = vmul.f32 %v465, %v557
        %v559 = vsub.f32 1.0, %v558
        %v560 = vmul.f32 %v557, %v559
        %v561 = vadd.f32 %v557, %v560
        %vm562 = vweird.f32 %v465
        %vm563 = vweird.f32 %v557
        %vm564 = vmor %vm562, %vm563
        %v565 = vsel %vm564, %v557, %v561
        %v566 = vand.u32 2147483647, %v465
        %vm567 = vcmp.eq.f32.partialorder %v566, 8.507059e+37
        %v568 = vand.u32 %v465, 2147483648
        %v569 = vor.u32 1.1754944e-38, %v568
        %v570 = vsel %vm567, %v569, %v565
        %v571 = vmul.f32 1.0, %v570
        %v572 = vrcp.pop %v466
        %v573 = vmul.f32 %v466, %v572
        %v574 = vsub.f32 1.0, %v573
        %v575 = vmul.f32 %v572, %v574
        %v576 = vadd.f32 %v572, %v575
        %vm577 = vweird.f32 %v466
        %vm578 = vweird.f32 %v572
        %vm579 = vmor %vm577, %vm578
        %v580 = vsel %vm579, %v572, %v576
        %v581 = vand.u32 2147483647, %v466
        %vm582 = vcmp.eq.f32.partialorder %v581, 8.507059e+37
        %v583 = vand.u32 %v466, 2147483648
        %v584 = vor.u32 1.1754944e-38, %v583
        %v585 = vsel %vm582, %v584, %v580
        %v586 = vmul.f32 1.0, %v585
        %v587 = vsub.f32 %v403, %v199
        %v588 = vsub.f32 %v404, %v200
        %v589 = vsub.f32 %v405, %v201
        %v590 = vsub.f32 %v406, %v202
        %v591 = vsub.f32 %v407, %v203
        %v592 = vsub.f32 %v408, %v204
        %v593 = vsub.f32 %v409, %v205
        %v594 = vsub.f32 %v410, %v206
        %v595 = vmul.f32 %v587, %v481
        %v596 = vmul.f32 %v588, %v496
        %v597 = vmul.f32 %v589, %v511
        %v598 = vmul.f32 %v590, %v526
        %v599 = vmul.f32 %v591, %v541
        %v600 = vmul.f32 %v592, %v556
        %v601 = vmul.f32 %v593, %v571
        %v602 = vmul.f32 %v594, %v586
        %v603 = vadd.f32 %v199, %v595
        %v604 = vadd.f32 %v200, %v596
        %v605 = vadd.f32 %v201, %v597
        %v606 = vadd.f32 %v202, %v598
        %v607 = vadd.f32 %v203, %v599
        %v608 = vadd.f32 %v204, %v600
        %v609 = vadd.f32 %v205, %v601
        %v610 = vadd.f32 %v206, %v602
        %v611 = vmax.f32 %v603, 0.0
        %v612 = vmax.f32 %v604, 0.0
        %v613 = vmax.f32 %v605, 0.0
        %v614 = vmax.f32 %v606, 0.0
        %v615 = vmax.f32 %v607, 0.0
        %v616 = vmax.f32 %v608, 0.0
        %v617 = vmax.f32 %v609, 0.0
        %v618 = vmax.f32 %v610, 0.0
        %619 = vst [vmem:[%s190] sm:$0xff] %v611
        %620 = vst [vmem:[%s190 + $0x8] sm:$0xff] %v612
        %621 = vst [vmem:[%s190 + $0x10] sm:$0xff] %v613
        %622 = vst [vmem:[%s190 + $0x18] sm:$0xff] %v614
        %623 = vst [vmem:[%s190 + $0x20] sm:$0xff] %v615
        %624 = vst [vmem:[%s190 + $0x28] sm:$0xff] %v616
        %625 = vst [vmem:[%s190 + $0x30] sm:$0xff] %v617
        %626 = vst [vmem:[%s190 + $0x38] sm:$0xff] %v618
        %s627 = sand.u32 %s96, 1
        %s628 = scalar_lea.sflag [#allocation4], %s627
        %s629 = sand.u32 %s96, 1
        %s630 = smul.addr %s629, 64
        %s631 = scalar_lea.vmem [#allocation5], %s630
        // Predicated region
        $region37: #{tpu_custom_call.1} parent=31 // pred_check
          %p632 = pneg %p106
        $region38: #{tpu_custom_call.1} parent=31 // pred_check_branch
          %634 = sbr.rel (%p632) target = $region40
        $region39: #{tpu_custom_call.1} parent=31 // pred_region
          %636 = vsyncadd %s628, 0
          %s637 = smul.addr %s20, 8
          %s638 = smul.addr %s637, 8
          %s639 = scalar_lea.hbm %s3, %s638
          %s640 = sshll.u32 %s631, 4
          %s641 = int_to_ptr.vmem [resolvable:$true] %s640
          %s642 = sshll.u32 %s639, 4
          %s643 = int_to_ptr.hbm [resolvable:$true] %s642
          %648 = dma.vmem_to_hbm [thread:$0]  %s641, 1024, %s643, %s628, 256, 256, 16
        $region40: #{tpu_custom_call.1} parent=31 // pred_fallthru
          _
      $region32: #{tpu_custom_call.1} parent=5 // pred_fallthru
        _
      %p649 = scmp.le.s32.totalorder 2, %s15
      // Predicated region
      $region41: #{tpu_custom_call.1} parent=5 // pred_check
        %p650 = pneg %p649
      $region42: #{tpu_custom_call.1} parent=5 // pred_check_branch
        %652 = sbr.rel (%p650) target = $region44
      $region43: #{tpu_custom_call.1} parent=5 // pred_region
        %s653 = ssub.s32 %s15, 2
        // Predicated region
        $region45: #{tpu_custom_call.1} parent=43 // pred_check
          %p654 = pneg %p112
        $region46: #{tpu_custom_call.1} parent=43 // pred_check_branch
          %656 = sbr.rel (%p654) target = $region48
        $region47: #{tpu_custom_call.1} parent=43 // pred_region
          %s657 = sand.u32 %s97, 1
          %s658 = scalar_lea.sflag [#allocation4], %s657
          %s659 = sand.u32 %s97, 1
          %s660 = smul.addr %s659, 64
          %s661 = scalar_lea.vmem [#allocation5], %s660
          %663 = dma.done %s658, 1024
        $region48: #{tpu_custom_call.1} parent=43 // pred_fallthru
          _
      $region44: #{tpu_custom_call.1} parent=5 // pred_fallthru
        _
    $region6: #{tpu_custom_call.1} parent=1 // loop_footer
      %s19 = sadd.s32 1, %s15
    $region7: #{tpu_custom_call.1} parent=1 // loop_footer_branch
      %14 = sbr.rel target = $region3
    $region8: #{tpu_custom_call.1} parent=1 // loop_exit
      _
    %664 = vsyncpa [#allocation3], 1
    %s665 = scalar_lea.sflag [#allocation3], 1
    %666 = vsyncpa %s665, 1
    %667 = vsyncpa [#allocation4], 1
    %s668 = scalar_lea.sflag [#allocation4], 1
    %669 = vsyncpa %s668, 1

</llo_original>
